<compile_context>
chip_gen: v7x
topology: tpu7x:2x2x1
jax: 0.10.0
libtpu: 0.0.40
codegen_flags: <defaults>
</compile_context>

<pallas_src>
import functools

import jax
import jax.numpy as jnp
from jax.experimental import pallas as pl
from jax.experimental.pallas import tpu as pltpu

BN_EPS = 1e-5
LEAKY_SLOPE = 0.1


def _round_up(x, m):
    return (x + m - 1) // m * m


# ---------------------------------------------------------------------------
# Pass 1: conv GEMM tile (channels on sublanes) + per-channel moment partials.
# ---------------------------------------------------------------------------
def _conv_moments_kernel(w_ref, p_ref, conv_ref, sum_ref, sumsq_ref):
    # w_ref:     (C_sub, K_pad)   bf16 weights (same block every grid step)
    # p_ref:     (1, K_pad, TM)   bf16 transposed im2col patch tile
    # conv_ref:  (1, C_sub, TM)   f32 raw conv tile
    # sum_ref:   (1, C_sub, 1)    f32 per-(batch, channel) partial sum
    # sumsq_ref: (1, C_sub, 1)    f32 per-(batch, channel) partial sum-of-squares
    @pl.when(pl.program_id(1) == 0)
    def _():
        sum_ref[...] = jnp.zeros_like(sum_ref)
        sumsq_ref[...] = jnp.zeros_like(sumsq_ref)

    conv = jnp.dot(w_ref[...], p_ref[0], preferred_element_type=jnp.float32)
    conv_ref[0] = conv

    # Lane (last-axis) reductions -> XLU; accumulators stay VMEM-resident
    # across the m ("arbitrary") grid axis.
    # NOTE: one-pass E[x^2]-E[x]^2 variance in f32; adequate for atol=0.1.
    sum_ref[0] += jnp.sum(conv, axis=1, keepdims=True)
    sumsq_ref[0] += jnp.sum(conv * conv, axis=1, keepdims=True)


# ---------------------------------------------------------------------------
# Pass 2: fused BN affine (precomputed scale/shift) + LeakyReLU(0.1).
# ---------------------------------------------------------------------------
def _bn_lrelu_kernel(conv_ref, scale_ref, shift_ref, o_ref):
    y = conv_ref[0] * scale_ref[...] + shift_ref[...]
    o_ref[0] = jnp.maximum(y, LEAKY_SLOPE * y)   # leaky_relu, slope < 1


def _im2col_t(x, kh, kw, stride, padding):
    """NCHW -> (N, C_in*KH*KW, OH*OW) transposed patches; K order = (C, KH, KW)."""
    n, c, h, w = x.shape
    xp = jnp.pad(x, ((0, 0), (0, 0), (padding, padding), (padding, padding)))
    oh = (h + 2 * padding - kh) // stride + 1
    ow = (w + 2 * padding - kw) // stride + 1
    cols = []
    for i in range(kh):
        for j in range(kw):
            cols.append(xp[:, :, i:i + stride * oh:stride, j:j + stride * ow:stride])
    p = jnp.stack(cols, axis=0).reshape(kh, kw, n, c, oh, ow)
    p = p.transpose(2, 3, 0, 1, 4, 5)            # (N, C, KH, KW, OH, OW)
    return p.reshape(n, c * kh * kw, oh * ow), oh, ow


@functools.partial(jax.jit, static_argnames=("kernel_size", "stride", "padding"))
def conv_layer_forward(x, conv_w, conv_b, bn_gamma, bn_beta,
                       *, kernel_size, stride, padding):
    """Equivalent of conv_layer.forward(x); x is NCHW, returns NCHW float32."""
    del conv_b  # exactly cancelled by training-mode BN mean subtraction
    n, c_in, h, w = x.shape
    c_out = conv_w.shape[0]
    kh = kw = kernel_size

    # bf16 GEMM operands (f32 accumulation inside the kernel).
    patches, oh, ow = _im2col_t(x.astype(jnp.bfloat16), kh, kw, stride, padding)
    _, k_true, m_per = patches.shape

    c_sub = _round_up(c_out, 8)            # channels on f32 sublanes
    k_pad = _round_up(k_true, 16)          # bf16 sublane packing; no 128-pad blowup
    tm = min(1024, _round_up(m_per, 128))  # lane-dense M tile (review: 512-1024)
    m_per_pad = _round_up(m_per, tm)
    num_m = m_per_pad // tm
    # Per-step double-buffered working set ~ 2*(k_pad*tm*2 + 2*c_sub*tm*4) bytes:
    # a few hundred KB here -> well under the 32 MiB scoped-VMEM limit on all gens.

    patches = jnp.pad(
        patches, ((0, 0), (0, k_pad - k_true), (0, m_per_pad - m_per)))

    # (C_out, C_in, KH, KW) -> (C_out, K), zero-padded to (C_sub, K_pad).
    w_mat = conv_w.reshape(c_out, c_in * kh * kw).astype(jnp.bfloat16)
    w_mat = jnp.pad(w_mat, ((0, c_sub - c_out), (0, k_pad - k_true)))

    gamma = jnp.pad(bn_gamma.astype(jnp.float32), (0, c_sub - c_out)).reshape(c_sub, 1)
    beta = jnp.pad(bn_beta.astype(jnp.float32), (0, c_sub - c_out)).reshape(c_sub, 1)

    conv_raw, ch_sum, ch_sumsq = pl.pallas_call(
        _conv_moments_kernel,
        out_shape=(
            jax.ShapeDtypeStruct((n, c_sub, m_per_pad), jnp.float32),
            jax.ShapeDtypeStruct((n, c_sub, 1), jnp.float32),
            jax.ShapeDtypeStruct((n, c_sub, 1), jnp.float32),
        ),
        grid=(n, num_m),
        in_specs=[
            pl.BlockSpec((c_sub, k_pad), lambda b, m: (0, 0)),
            pl.BlockSpec((1, k_pad, tm), lambda b, m: (b, 0, m)),
        ],
        out_specs=(
            pl.BlockSpec((1, c_sub, tm), lambda b, m: (b, 0, m)),
            pl.BlockSpec((1, c_sub, 1), lambda b, m: (b, 0, 0)),
            pl.BlockSpec((1, c_sub, 1), lambda b, m: (b, 0, 0)),
        ),
        compiler_params=pltpu.CompilerParams(
            # batch axis parallel (both v7x TCs), m axis is the moment reduction
            dimension_semantics=("parallel", "arbitrary"),
            vmem_limit_bytes=32 * 1024 * 1024),
    )(w_mat, patches)

    # Finalize batch stats on tiny (C_sub, 1) arrays in plain JAX.  Padded
    # patch columns / channels contribute 0 to both sums -> divide by true M.
    count = float(n * oh * ow)
    mean = jnp.sum(ch_sum, axis=0) / count
    var = jnp.maximum(jnp.sum(ch_sumsq, axis=0) / count - mean * mean, 0.0)
    inv_std = jax.lax.rsqrt(var + BN_EPS)
    scale = gamma * inv_std
    shift = beta - mean * scale

    out = pl.pallas_call(
        _bn_lrelu_kernel,
        out_shape=jax.ShapeDtypeStruct((n, c_sub, m_per_pad), jnp.float32),
        grid=(n, num_m),
        in_specs=[
            pl.BlockSpec((1, c_sub, tm), lambda b, m: (b, 0, m)),
            pl.BlockSpec((c_sub, 1), lambda b, m: (0, 0)),
            pl.BlockSpec((c_sub, 1), lambda b, m: (0, 0)),
        ],
        out_specs=pl.BlockSpec((1, c_sub, tm), lambda b, m: (b, 0, m)),
        input_output_aliases={0: 0},   # reuse conv_raw's buffer in place
        compiler_params=pltpu.CompilerParams(
            dimension_semantics=("parallel", "parallel"),
            vmem_limit_bytes=32 * 1024 * 1024),
    )(conv_raw, scale, shift)

    # (N, C_sub, M_pad) is already channel-major: slice any padding (no-op for
    # this layer's shapes) and reshape straight to NCHW -- no transpose.
    out = out[:, :c_out, :m_per].reshape(n, c_out, oh, ow)
    return out


def init_params(key, in_maps, out_maps, kernel_size):
    """Deterministic parameter init mimicking PyTorch defaults (shapes matter)."""
    k_w, k_b = jax.random.split(key)
    fan_in = in_maps * kernel_size * kernel_size
    bound = 1.0 / jnp.sqrt(fan_in)
    conv_w = jax.random.uniform(
        k_w, (out_maps, in_maps, kernel_size, kernel_size),
        minval=-bound, maxval=bound, dtype=jnp.float32)
    conv_b = jax.random.uniform(
        k_b, (out_maps,), minval=-bound, maxval=bound, dtype=jnp.float32)
    bn_gamma = jnp.ones((out_maps,), jnp.float32)
    bn_beta = jnp.zeros((out_maps,), jnp.float32)
    return conv_w, conv_b, bn_gamma, bn_beta


def _reference(x, conv_w, conv_b, bn_gamma, bn_beta, *, stride, padding):
    """Pure-JAX f32 reference of the PyTorch forward (training-mode BN)."""
    conv = jax.lax.conv_general_dilated(
        x, conv_w, window_strides=(stride, stride),
        padding=[(padding, padding), (padding, padding)],
        dimension_numbers=("NCHW", "OIHW", "NCHW"))
    conv = conv + conv_b[None, :, None, None]
    mean = conv.mean(axis=(0, 2, 3), keepdims=True)
    var = conv.var(axis=(0, 2, 3), keepdims=True)       # biased variance
    y = (conv - mean) * jax.lax.rsqrt(var + BN_EPS)
    y = y * bn_gamma[None, :, None, None] + bn_beta[None, :, None, None]
    return jnp.where(y > 0, y, LEAKY_SLOPE * y)


if __name__ == "__main__":
    # conv_layer(in_maps=4, out_maps=8, kernel_size=3, stride=1, padding=1)
    in_maps, out_maps, kernel_size, stride, padding = 4, 8, 3, 1, 1

    key = jax.random.PRNGKey(0)
    k_x, k_p = jax.random.split(key)
    x = jax.random.normal(k_x, (2, in_maps, 16, 16), dtype=jnp.float32)  # NCHW
    conv_w, conv_b, bn_gamma, bn_beta = init_params(k_p, in_maps, out_maps, kernel_size)

    out = conv_layer_forward(
        x, conv_w, conv_b, bn_gamma, bn_beta,
        kernel_size=kernel_size, stride=stride, padding=padding)
    out = jax.block_until_ready(out)

    assert out.shape == (2, out_maps, 16, 16), out.shape
    assert out.dtype == jnp.float32
    assert bool(jnp.all(jnp.isfinite(out)))

    # Loose tolerance: kernel uses bf16 GEMM operands with f32 accumulation.
    ref = _reference(x, conv_w, conv_b, bn_gamma, bn_beta,
                     stride=stride, padding=padding)
    assert bool(jnp.allclose(out, ref, atol=0.1, rtol=0.1)), \
        float(jnp.max(jnp.abs(out - ref)))

    print("KERNEL_OK")
</pallas_src>

<mosaic_0001>
module attributes {stable_mosaic.version = 11 : i64} {
  func.func @_conv_moments_kernel(%arg0: i32, %arg1: i32, %arg2: memref<8x48xbf16, #tpu.memory_space<vmem>>, %arg3: memref<1x48x256xbf16, #tpu.memory_space<vmem>>, %arg4: memref<1x8x256xf32, #tpu.memory_space<vmem>>, %arg5: memref<1x8x1xf32, #tpu.memory_space<vmem>>, %arg6: memref<1x8x1xf32, #tpu.memory_space<vmem>>) attributes {dimension_semantics = [#tpu.dimension_semantics<parallel>, #tpu.dimension_semantics<arbitrary>], iteration_bounds = array<i64: 2, 1>, scalar_prefetch = 0 : i64, scratch_operands = 0 : i64, tpu.core_type = #tpu.core_type<tc>, window_params = [{pipeline_mode = #tpu.pipeline_mode<synchronous>, transform_indices = @transform_0, window_bounds = array<i64: 8, 48>}, {transform_indices = @transform_1, window_bounds = array<i64: 1, 48, 256>}, {transform_indices = @transform_2, window_bounds = array<i64: 1, 8, 256>}, {transform_indices = @transform_3, window_bounds = array<i64: 1, 8, 1>}, {transform_indices = @transform_4, window_bounds = array<i64: 1, 8, 1>}]} {
    %c0_i32 = arith.constant 0 : i32
    %0 = arith.cmpi eq, %arg1, %c0_i32 : i32
    %1 = arith.extui %0 : i1 to i32
    %c0_i32_0 = arith.constant 0 : i32
    %2 = arith.cmpi ne, %1, %c0_i32_0 : i32
    scf.if %2 {
      %cst_22 = arith.constant 0.000000e+00 : f32
      %27 = vector.broadcast %cst_22 : f32 to vector<1x8x1xf32>
      %c0_23 = arith.constant 0 : index
      %c0_24 = arith.constant 0 : index
      %c0_25 = arith.constant 0 : index
      %28 = vector.load %arg5[%c0_23, %c0_24, %c0_25] : memref<1x8x1xf32, #tpu.memory_space<vmem>>, vector<1x8x1xf32>
      tpu.vector_store %arg5[%c0_23, %c0_24, %c0_25], %27 {strides = array<i32>} : memref<1x8x1xf32, #tpu.memory_space<vmem>>, vector<1x8x1xf32>,
      %cst_26 = arith.constant 0.000000e+00 : f32
      %29 = vector.broadcast %cst_26 : f32 to vector<1x8x1xf32>
      %c0_27 = arith.constant 0 : index
      %c0_28 = arith.constant 0 : index
      %c0_29 = arith.constant 0 : index
      %30 = vector.load %arg6[%c0_27, %c0_28, %c0_29] : memref<1x8x1xf32, #tpu.memory_space<vmem>>, vector<1x8x1xf32>
      tpu.vector_store %arg6[%c0_27, %c0_28, %c0_29], %29 {strides = array<i32>} : memref<1x8x1xf32, #tpu.memory_space<vmem>>, vector<1x8x1xf32>,
    } else {
    }
    %c0 = arith.constant 0 : index
    %c0_1 = arith.constant 0 : index
    %3 = vector.load %arg2[%c0, %c0_1] : memref<8x48xbf16, #tpu.memory_space<vmem>>, vector<8x48xbf16>
    %c0_2 = arith.constant 0 : index
    %c0_3 = arith.constant 0 : index
    %c0_4 = arith.constant 0 : index
    %4 = vector.load %arg3[%c0_2, %c0_3, %c0_4] : memref<1x48x256xbf16, #tpu.memory_space<vmem>>, vector<1x48x256xbf16>
    %5 = vector.shape_cast %4 : vector<1x48x256xbf16> to vector<48x256xbf16>
    %cst = arith.constant dense<0.000000e+00> : vector<8x256xf32>
    %6 = tpu.matmul %3, %5, %cst {dimension_numbers = #tpu.dot_dimension_numbers<[1], [0], [0], [1], [0, 0, 1, 1], [], []>} : vector<8x48xbf16>, vector<48x256xbf16>, vector<8x256xf32> -> vector<8x256xf32>
    %c0_5 = arith.constant 0 : index
    %c0_6 = arith.constant 0 : index
    %c0_7 = arith.constant 0 : index
    %7 = vector.load %arg4[%c0_5, %c0_6, %c0_7] : memref<1x8x256xf32, #tpu.memory_space<vmem>>, vector<1x8x256xf32>
    %8 = vector.shape_cast %7 : vector<1x8x256xf32> to vector<8x256xf32>
    %9 = vector.shape_cast %6 : vector<8x256xf32> to vector<1x8x256xf32>
    tpu.vector_store %arg4[%c0_5, %c0_6, %c0_7], %9 {strides = array<i32>} : memref<1x8x256xf32, #tpu.memory_space<vmem>>, vector<1x8x256xf32>,
    %c0_8 = arith.constant 0 : index
    %c0_9 = arith.constant 0 : index
    %c0_10 = arith.constant 0 : index
    %10 = vector.load %arg5[%c0_8, %c0_9, %c0_10] : memref<1x8x1xf32, #tpu.memory_space<vmem>>, vector<1x8x1xf32>
    %11 = vector.shape_cast %10 : vector<1x8x1xf32> to vector<8x1xf32>
    %cst_11 = arith.constant dense<0.000000e+00> : vector<8xf32>
    %12 = vector.multi_reduction <add>, %6, %cst_11 [1] : vector<8x256xf32> to vector<8xf32>
    %13 = vector.shape_cast %12 : vector<8xf32> to vector<8x1xf32>
    %14 = arith.addf %11, %13 : vector<8x1xf32>
    %c0_12 = arith.constant 0 : index
    %c0_13 = arith.constant 0 : index
    %c0_14 = arith.constant 0 : index
    %15 = vector.load %arg5[%c0_12, %c0_13, %c0_14] : memref<1x8x1xf32, #tpu.memory_space<vmem>>, vector<1x8x1xf32>
    %16 = vector.shape_cast %15 : vector<1x8x1xf32> to vector<8x1xf32>
    %17 = vector.shape_cast %14 : vector<8x1xf32> to vector<1x8x1xf32>
    tpu.vector_store %arg5[%c0_12, %c0_13, %c0_14], %17 {strides = array<i32>} : memref<1x8x1xf32, #tpu.memory_space<vmem>>, vector<1x8x1xf32>,
    %c0_15 = arith.constant 0 : index
    %c0_16 = arith.constant 0 : index
    %c0_17 = arith.constant 0 : index
    %18 = vector.load %arg6[%c0_15, %c0_16, %c0_17] : memref<1x8x1xf32, #tpu.memory_space<vmem>>, vector<1x8x1xf32>
    %19 = vector.shape_cast %18 : vector<1x8x1xf32> to vector<8x1xf32>
    %20 = arith.mulf %6, %6 : vector<8x256xf32>
    %cst_18 = arith.constant dense<0.000000e+00> : vector<8xf32>
    %21 = vector.multi_reduction <add>, %20, %cst_18 [1] : vector<8x256xf32> to vector<8xf32>
    %22 = vector.shape_cast %21 : vector<8xf32> to vector<8x1xf32>
    %23 = arith.addf %19, %22 : vector<8x1xf32>
    %c0_19 = arith.constant 0 : index
    %c0_20 = arith.constant 0 : index
    %c0_21 = arith.constant 0 : index
    %24 = vector.load %arg6[%c0_19, %c0_20, %c0_21] : memref<1x8x1xf32, #tpu.memory_space<vmem>>, vector<1x8x1xf32>
    %25 = vector.shape_cast %24 : vector<1x8x1xf32> to vector<8x1xf32>
    %26 = vector.shape_cast %23 : vector<8x1xf32> to vector<1x8x1xf32>
    tpu.vector_store %arg6[%c0_19, %c0_20, %c0_21], %26 {strides = array<i32>} : memref<1x8x1xf32, #tpu.memory_space<vmem>>, vector<1x8x1xf32>,
    return
  }
  func.func @transform_0(%arg0: i32, %arg1: i32) -> (i32, i32) {
    %c0_i32 = arith.constant 0 : i32
    %c0_i32_0 = arith.constant 0 : i32
    %c0_i32_1 = arith.constant 0 : i32
    return %c0_i32, %c0_i32_0 : i32, i32
  }
  func.func @transform_1(%arg0: i32, %arg1: i32) -> (i32, i32, i32) {
    %c0_i32 = arith.constant 0 : i32
    %c0_i32_0 = arith.constant 0 : i32
    return %arg0, %c0_i32, %arg1 : i32, i32, i32
  }
  func.func @transform_2(%arg0: i32, %arg1: i32) -> (i32, i32, i32) {
    %c0_i32 = arith.constant 0 : i32
    %c0_i32_0 = arith.constant 0 : i32
    return %arg0, %c0_i32, %arg1 : i32, i32, i32
  }
  func.func @transform_3(%arg0: i32, %arg1: i32) -> (i32, i32, i32) {
    %c0_i32 = arith.constant 0 : i32
    %c0_i32_0 = arith.constant 0 : i32
    %c0_i32_1 = arith.constant 0 : i32
    return %arg0, %c0_i32, %c0_i32_0 : i32, i32, i32
  }
  func.func @transform_4(%arg0: i32, %arg1: i32) -> (i32, i32, i32) {
    %c0_i32 = arith.constant 0 : i32
    %c0_i32_0 = arith.constant 0 : i32
    %c0_i32_1 = arith.constant 0 : i32
    return %arg0, %c0_i32, %c0_i32_0 : i32, i32, i32
  }
}

module attributes {stable_mosaic.version = 11 : i64} {
  func.func @_bn_lrelu_kernel(%arg0: i32, %arg1: i32, %arg2: memref<1x8x256xf32, #tpu.memory_space<vmem>>, %arg3: memref<8x1xf32, #tpu.memory_space<vmem>>, %arg4: memref<8x1xf32, #tpu.memory_space<vmem>>, %arg5: memref<1x8x256xf32, #tpu.memory_space<vmem>>) attributes {dimension_semantics = [#tpu.dimension_semantics<parallel>, #tpu.dimension_semantics<parallel>], iteration_bounds = array<i64: 2, 1>, scalar_prefetch = 0 : i64, scratch_operands = 0 : i64, tpu.core_type = #tpu.core_type<tc>, window_params = [{transform_indices = @transform_0, window_bounds = array<i64: 1, 8, 256>}, {pipeline_mode = #tpu.pipeline_mode<synchronous>, transform_indices = @transform_1, window_bounds = array<i64: 8, 1>}, {pipeline_mode = #tpu.pipeline_mode<synchronous>, transform_indices = @transform_2, window_bounds = array<i64: 8, 1>}, {transform_indices = @transform_3, window_bounds = array<i64: 1, 8, 256>}]} {
    %c0 = arith.constant 0 : index
    %c0_0 = arith.constant 0 : index
    %c0_1 = arith.constant 0 : index
    %0 = vector.load %arg2[%c0, %c0_0, %c0_1] : memref<1x8x256xf32, #tpu.memory_space<vmem>>, vector<1x8x256xf32>
    %1 = vector.shape_cast %0 : vector<1x8x256xf32> to vector<8x256xf32>
    %c0_2 = arith.constant 0 : index
    %c0_3 = arith.constant 0 : index
    %2 = vector.load %arg3[%c0_2, %c0_3] : memref<8x1xf32, #tpu.memory_space<vmem>>, vector<8x1xf32>
    %3 = vector.broadcast %2 : vector<8x1xf32> to vector<8x256xf32>
    %4 = arith.mulf %1, %3 : vector<8x256xf32>
    %c0_4 = arith.constant 0 : index
    %c0_5 = arith.constant 0 : index
    %5 = vector.load %arg4[%c0_4, %c0_5] : memref<8x1xf32, #tpu.memory_space<vmem>>, vector<8x1xf32>
    %6 = vector.broadcast %5 : vector<8x1xf32> to vector<8x256xf32>
    %7 = arith.addf %4, %6 : vector<8x256xf32>
    %cst = arith.constant 1.000000e-01 : f32
    %8 = vector.broadcast %cst : f32 to vector<8x256xf32>
    %9 = arith.mulf %8, %7 : vector<8x256xf32>
    %10 = arith.maximumf %7, %9 : vector<8x256xf32>
    %c0_6 = arith.constant 0 : index
    %c0_7 = arith.constant 0 : index
    %c0_8 = arith.constant 0 : index
    %11 = vector.load %arg5[%c0_6, %c0_7, %c0_8] : memref<1x8x256xf32, #tpu.memory_space<vmem>>, vector<1x8x256xf32>
    %12 = vector.shape_cast %11 : vector<1x8x256xf32> to vector<8x256xf32>
    %13 = vector.shape_cast %10 : vector<8x256xf32> to vector<1x8x256xf32>
    tpu.vector_store %arg5[%c0_6, %c0_7, %c0_8], %13 {strides = array<i32>} : memref<1x8x256xf32, #tpu.memory_space<vmem>>, vector<1x8x256xf32>,
    return
  }
  func.func @transform_0(%arg0: i32, %arg1: i32) -> (i32, i32, i32) {
    %c0_i32 = arith.constant 0 : i32
    %c0_i32_0 = arith.constant 0 : i32
    return %arg0, %c0_i32, %arg1 : i32, i32, i32
  }
  func.func @transform_1(%arg0: i32, %arg1: i32) -> (i32, i32) {
    %c0_i32 = arith.constant 0 : i32
    %c0_i32_0 = arith.constant 0 : i32
    %c0_i32_1 = arith.constant 0 : i32
    return %c0_i32, %c0_i32_0 : i32, i32
  }
  func.func @transform_2(%arg0: i32, %arg1: i32) -> (i32, i32) {
    %c0_i32 = arith.constant 0 : i32
    %c0_i32_0 = arith.constant 0 : i32
    %c0_i32_1 = arith.constant 0 : i32
    return %c0_i32, %c0_i32_0 : i32, i32
  }
  func.func @transform_3(%arg0: i32, %arg1: i32) -> (i32, i32, i32) {
    %c0_i32 = arith.constant 0 : i32
    %c0_i32_0 = arith.constant 0 : i32
    return %arg0, %c0_i32, %arg1 : i32, i32, i32
  }
}

</mosaic_0001>

<llo_original>
// kernel: conv_layer_forward.3
$region0: #{conv_layer_forward.3}
  #allocation0 [shape = 'u32[]', space=smem, size = 0x4, offset = 0x4, fixed_abs, tag = 'smem constant byte address 0x4 - core index']
  #allocation1 [shape = 'u32[144,128]{1,0:T(1,128)}', space=vmem, size = 0x12000, scoped, tag = 'internal scratch']
  %s0 = inlined_call_operand.vmem [shape: f32[2,8,256], index: 0, kind: input, shape index: {}, may-alias: {0,3}]
  %s1 = inlined_call_operand.vmem [shape: f32[8,1], index: 1, kind: input, shape index: {}]
  %s2 = inlined_call_operand.vmem [shape: f32[8,1], index: 2, kind: input, shape index: {}]
  %s3 = inlined_call_operand.vmem [shape: f32[2,8,256], index: 3, kind: output, shape index: {}, may-alias: {0,3}]
  %s4 = sld [smem:[#allocation0]]
  $region45: #{conv_layer_forward.3} parent=0
    _
  %s6 = ssub.s32 1, %s4
  %s7 = scalar_select 0, %s6, %s4
  loop: start=0, step=1, limit=4
  $region2: #{conv_layer_forward.3} parent=0 // loop_pre_header
    _
  $region3: #{conv_layer_forward.3} parent=0 // loop_header
    %s9 = sphi 0, %s13
    %p10 = scmp.ge.s32.totalorder %s9, 4
    %s16 = sphi 0, %s28
    %s17 = sphi 0, %s24
    %s18 = sphi 0, %s16
    %s19 = sphi 0, %s17
    %s20 = sphi 0, %s18
    %s21 = sphi 0, %s19
    %s33 = sphi 0, %s35
    %s36 = sphi 0, %s33
    %s37 = sphi 0, %s36
    %s53 = sphi 0, %s37
    %s57 = sphi 0, %s57
    %s59 = sphi 0, %s57
    %s60 = sphi 0, %s59
    %s74 = sphi 0, %s60
    %s78 = sphi 0, %s78
    %s80 = sphi 0, %s78
    %s81 = sphi 0, %s80
    %s95 = sphi 0, %s81
    %s103 = sphi 0, %s105
    %s106 = sphi 0, %s103
    %s107 = sphi 0, %s106
    %s123 = sphi 0, %s107
  $region4: #{conv_layer_forward.3} parent=0 // loop_header_branch
    %12 = sbr.rel (%p10) target = $region8
  $region5: #{conv_layer_forward.3} parent=0 // loop_body
    %s14 = ssub.s32 %s9, 1
    %s15 = ssub.s32 %s9, 2
    %s22 = sadd.s32 1, %s17
    %p23 = scmp.ge.s32.totalorder %s22, 1
    %s24 = scalar_select %p23, 0, %s22
    %s25 = sadd.s32 1, %s16
    %s26 = scalar_select %p23, %s25, %s16
    %p27 = scmp.ge.s32.totalorder %s26, 2
    %s28 = scalar_select %p27, 0, %s26
    %s29 = ssub.s32 %s16, %s28
    %s30 = ssub.s32 %s17, %s24
    %s31 = sor.u32 %s29, %s30
    %p32 = scmp.eq.s32.totalorder %s31, 0
    %s34 = sadd.s32 %s33, 1
    %s35 = scalar_select %p32, %s33, %s34
    %p38 = pneg %p32
    %p39 = scmp.eq.s32.totalorder %s9, 1
    %p40 = por %p38, %p39
    %p41 = scmp.ne.s32.totalorder %s33, %s36
    %p42 = scmp.eq.s32.totalorder %s9, 0
    %p43 = por %p41, %p42
    %p44 = scmp.ne.s32.totalorder %s33, %s36
    %p45 = scmp.eq.s32.totalorder %s14, 1
    %p46 = por %p44, %p45
    %p47 = scmp.ne.s32.totalorder %s36, %s37
    %p48 = scmp.eq.s32.totalorder %s14, 0
    %p49 = por %p47, %p48
    %p50 = scmp.ne.s32.totalorder %s36, %s37
    %p51 = scmp.eq.s32.totalorder %s15, 1
    %p52 = por %p50, %p51
    %p54 = scmp.ne.s32.totalorder %s37, %s53
    %p55 = scmp.eq.s32.totalorder %s15, 0
    %p56 = por %p54, %p55
    %s58 = sadd.s32 %s57, 1
    %p61 = scmp.eq.s32.totalorder %s9, 1
    %p62 = scmp.ne.s32.totalorder %s57, %s59
    %p63 = scmp.eq.s32.totalorder %s9, 0
    %p64 = por %p62, %p63
    %p65 = scmp.ne.s32.totalorder %s57, %s59
    %p66 = scmp.eq.s32.totalorder %s14, 1
    %p67 = por %p65, %p66
    %p68 = scmp.ne.s32.totalorder %s59, %s60
    %p69 = scmp.eq.s32.totalorder %s14, 0
    %p70 = por %p68, %p69
    %p71 = scmp.ne.s32.totalorder %s59, %s60
    %p72 = scmp.eq.s32.totalorder %s15, 1
    %p73 = por %p71, %p72
    %p75 = scmp.ne.s32.totalorder %s60, %s74
    %p76 = scmp.eq.s32.totalorder %s15, 0
    %p77 = por %p75, %p76
    %s79 = sadd.s32 %s78, 1
    %p82 = scmp.eq.s32.totalorder %s9, 1
    %p83 = scmp.ne.s32.totalorder %s78, %s80
    %p84 = scmp.eq.s32.totalorder %s9, 0
    %p85 = por %p83, %p84
    %p86 = scmp.ne.s32.totalorder %s78, %s80
    %p87 = scmp.eq.s32.totalorder %s14, 1
    %p88 = por %p86, %p87
    %p89 = scmp.ne.s32.totalorder %s80, %s81
    %p90 = scmp.eq.s32.totalorder %s14, 0
    %p91 = por %p89, %p90
    %p92 = scmp.ne.s32.totalorder %s80, %s81
    %p93 = scmp.eq.s32.totalorder %s15, 1
    %p94 = por %p92, %p93
    %p96 = scmp.ne.s32.totalorder %s81, %s95
    %p97 = scmp.eq.s32.totalorder %s15, 0
    %p98 = por %p96, %p97
    %s99 = ssub.s32 %s16, %s28
    %s100 = ssub.s32 %s17, %s24
    %s101 = sor.u32 %s99, %s100
    %p102 = scmp.eq.s32.totalorder %s101, 0
    %s104 = sadd.s32 %s103, 1
    %s105 = scalar_select %p102, %s103, %s104
    %p108 = pneg %p102
    %p109 = scmp.eq.s32.totalorder %s9, 1
    %p110 = por %p108, %p109
    %p111 = scmp.ne.s32.totalorder %s103, %s106
    %p112 = scmp.eq.s32.totalorder %s9, 0
    %p113 = por %p111, %p112
    %p114 = scmp.ne.s32.totalorder %s103, %s106
    %p115 = scmp.eq.s32.totalorder %s14, 1
    %p116 = por %p114, %p115
    %p117 = scmp.ne.s32.totalorder %s106, %s107
    %p118 = scmp.eq.s32.totalorder %s14, 0
    %p119 = por %p117, %p118
    %p120 = scmp.ne.s32.totalorder %s106, %s107
    %p121 = scmp.eq.s32.totalorder %s15, 1
    %p122 = por %p120, %p121
    %p124 = scmp.ne.s32.totalorder %s107, %s123
    %p125 = scmp.eq.s32.totalorder %s15, 0
    %p126 = por %p124, %p125
    %p127 = scmp.le.s32.totalorder 1, %s9
    %p128 = scmp.lt.s32.totalorder %s9, 3
    %p129 = pnand %p127, %p128
    %p130 = pneg %p129
    // Predicated region
    $region9: #{conv_layer_forward.3} parent=5 // pred_check
      _
    $region10: #{conv_layer_forward.3} parent=5 // pred_check_branch
      %132 = sbr.rel (%p129) target = $region12
    $region11: #{conv_layer_forward.3} parent=5 // pred_region
      %s133 = ssub.s32 %s9, 1
      // Predicated region
      $region13: #{conv_layer_forward.3} parent=11 // pred_check
        %p134 = pneg %p70
      $region14: #{conv_layer_forward.3} parent=11 // pred_check_branch
        %136 = sbr.rel (%p134) target = $region16
      $region15: #{conv_layer_forward.3} parent=11 // pred_region
        _
      $region16: #{conv_layer_forward.3} parent=11 // pred_fallthru
        _
      // Predicated region
      $region17: #{conv_layer_forward.3} parent=11 // pred_check
        %p137 = pneg %p91
      $region18: #{conv_layer_forward.3} parent=11 // pred_check_branch
        %139 = sbr.rel (%p137) target = $region20
      $region19: #{conv_layer_forward.3} parent=11 // pred_region
        _
      $region20: #{conv_layer_forward.3} parent=11 // pred_fallthru
        _
    $region12: #{conv_layer_forward.3} parent=5 // pred_fallthru
      _
    %p140 = scmp.lt.s32.totalorder %s9, 2
    // Predicated region
    $region21: #{conv_layer_forward.3} parent=5 // pred_check
      %p141 = pneg %p140
    $region22: #{conv_layer_forward.3} parent=5 // pred_check_branch
      %143 = sbr.rel (%p141) target = $region24
    $region23: #{conv_layer_forward.3} parent=5 // pred_region
      // Predicated region
      $region25: #{conv_layer_forward.3} parent=23 // pred_check
        %p144 = pneg %p43
      $region26: #{conv_layer_forward.3} parent=23 // pred_check_branch
        %146 = sbr.rel (%p144) target = $region28
      $region27: #{conv_layer_forward.3} parent=23 // pred_region
        %s147 = smul.u32 2, %s17
        %p148 = scmp.lt.s32.totalorder %s16, 1
        %s149 = scalar_select %p148, %s16, 1
        %p150 = scmp.lt.s32.totalorder %s147, 1
        %s151 = scalar_select %p150, %s147, 1
        %s152 = smul.addr %s149, 2
        %s153 = sadd.s32 %s151, %s152
        %s154 = smul.addr %s153, 8
        %s155 = scalar_lea.vmem %s0, %s154
        %s156 = smul.u32 2, %s17
      $region28: #{conv_layer_forward.3} parent=23 // pred_fallthru
        _
    $region24: #{conv_layer_forward.3} parent=5 // pred_fallthru
      _
    %p157 = scmp.le.s32.totalorder 1, %s9
    %p158 = scmp.lt.s32.totalorder %s9, 3
    %p159 = pnand %p157, %p158
    %p160 = pneg %p159
    // Predicated region
    $region29: #{conv_layer_forward.3} parent=5 // pred_check
      _
    $region30: #{conv_layer_forward.3} parent=5 // pred_check_branch
      %162 = sbr.rel (%p159) target = $region32
    $region31: #{conv_layer_forward.3} parent=5 // pred_region
      %s163 = ssub.s32 %s9, 1
      %s164 = smul.u32 2, %s19
      %p165 = scmp.lt.s32.totalorder %s18, 1
      %s166 = scalar_select %p165, %s18, 1
      %p167 = scmp.lt.s32.totalorder %s164, 1
      %s168 = scalar_select %p167, %s164, 1
      %s169 = smul.addr %s166, 2
      %s170 = sadd.s32 %s168, %s169
      %s171 = smul.addr %s170, 8
      %s172 = scalar_lea.vmem %s0, %s171
      %p173 = pneg %p49
      %p174 = pneg %p46
      %p175 = pneg %p70
      %p176 = pneg %p67
      %p177 = pneg %p91
      %p178 = pneg %p88
      %p179 = pneg %p119
      %p180 = pneg %p116
      %s181 = smul.u32 2, %s19
      %p182 = scmp.lt.s32.totalorder %s18, 1
      %s183 = scalar_select %p182, %s18, 1
      %p184 = scmp.lt.s32.totalorder %s181, 1
      %s185 = scalar_select %p184, %s181, 1
      %s186 = smul.addr %s183, 2
      %s187 = sadd.s32 %s185, %s186
      %s188 = smul.addr %s187, 8
      %s189 = scalar_lea.vmem %s3, %s188
      %s190 = smul.u32 2, %s19
      %p191 = scmp.lt.s32.totalorder %s18, 1
      %s192 = scalar_select %p191, %s18, 1
      %p193 = scmp.lt.s32.totalorder %s190, 1
      %s194 = scalar_select %p193, %s190, 1
      %s195 = smul.addr %s192, 2
      %s196 = sadd.s32 %s194, %s195
      %s197 = smul.addr %s196, 8
      %s198 = scalar_lea.vmem %s0, %s197
      %s199 = smul.u32 2, %s19
      %s200 = smul.u32 2, %s19
      %p201 = scmp.lt.s32.totalorder %s18, 1
      %s202 = scalar_select %p201, %s18, 1
      %p203 = scmp.lt.s32.totalorder %s200, 1
      %s204 = scalar_select %p203, %s200, 1
      %s205 = smul.addr %s202, 2
      %s206 = sadd.s32 %s204, %s205
      %s207 = smul.addr %s206, 8
      %s208 = scalar_lea.vmem %s3, %s207
      %s209 = smul.u32 2, %s19
      %v210 = vld [vmem:[%s198] sm:$0xff]
      %v211 = vld [vmem:[%s198 + $0x8] sm:$0xff]
      %v212 = vld [vmem:[%s1] sm:$0xff]
      %214 = vset.pattern.permute.xlu0 0
      %215 = vperm.xlu0 %214, %v212
      %v216 = vpop.permute.xlu0 %215
      %v218 = vmul.f32 %v210, %v216
      %v219 = vmul.f32 %v211, %v216
      %v220 = vld [vmem:[%s2] sm:$0xff]
      %222 = vset.pattern.permute.xlu0 0
      %223 = vperm.xlu0 %222, %v220
      %v224 = vpop.permute.xlu0 %223
      %v226 = vadd.f32 %v218, %v224
      %v227 = vadd.f32 %v219, %v224
      %v228 = vmul.f32 %v226, 0.1
      %v229 = vmul.f32 %v227, 0.1
      %v230 = vmax.f32 %v226, %v228
      %v231 = vmax.f32 %v227, %v229
      %232 = vst [vmem:[%s208] sm:$0xff] %v230
      %233 = vst [vmem:[%s208 + $0x8] sm:$0xff] %v231
      %s234 = smul.u32 2, %s19
      %p235 = scmp.lt.s32.totalorder %s18, 1
      %s236 = scalar_select %p235, %s18, 1
      %p237 = scmp.lt.s32.totalorder %s234, 1
      %s238 = scalar_select %p237, %s234, 1
      %s239 = smul.addr %s236, 2
      %s240 = sadd.s32 %s238, %s239
      %s241 = smul.addr %s240, 8
      %s242 = scalar_lea.vmem %s3, %s241
      // Predicated region
      $region33: #{conv_layer_forward.3} parent=31 // pred_check
        %p243 = pneg %p116
      $region34: #{conv_layer_forward.3} parent=31 // pred_check_branch
        %245 = sbr.rel (%p243) target = $region36
      $region35: #{conv_layer_forward.3} parent=31 // pred_region
        %s246 = smul.u32 2, %s19
      $region36: #{conv_layer_forward.3} parent=31 // pred_fallthru
        _
    $region32: #{conv_layer_forward.3} parent=5 // pred_fallthru
      _
    %p247 = scmp.le.s32.totalorder 2, %s9
    // Predicated region
    $region37: #{conv_layer_forward.3} parent=5 // pred_check
      %p248 = pneg %p247
    $region38: #{conv_layer_forward.3} parent=5 // pred_check_branch
      %250 = sbr.rel (%p248) target = $region40
    $region39: #{conv_layer_forward.3} parent=5 // pred_region
      %s251 = ssub.s32 %s9, 2
      // Predicated region
      $region41: #{conv_layer_forward.3} parent=39 // pred_check
        %p252 = pneg %p122
      $region42: #{conv_layer_forward.3} parent=39 // pred_check_branch
        %254 = sbr.rel (%p252) target = $region44
      $region43: #{conv_layer_forward.3} parent=39 // pred_region
        %s255 = smul.u32 2, %s21
        %p256 = scmp.lt.s32.totalorder %s20, 1
        %s257 = scalar_select %p256, %s20, 1
        %p258 = scmp.lt.s32.totalorder %s255, 1
        %s259 = scalar_select %p258, %s255, 1
        %s260 = smul.addr %s257, 2
        %s261 = sadd.s32 %s259, %s260
        %s262 = smul.addr %s261, 8
        %s263 = scalar_lea.vmem %s3, %s262
      $region44: #{conv_layer_forward.3} parent=39 // pred_fallthru
        _
    $region40: #{conv_layer_forward.3} parent=5 // pred_fallthru
      _
  $region6: #{conv_layer_forward.3} parent=0 // loop_footer
    %s13 = sadd.s32 1, %s9
  $region7: #{conv_layer_forward.3} parent=0 // loop_footer_branch
    %8 = sbr.rel target = $region3
  $region8: #{conv_layer_forward.3} parent=0 // loop_exit
    _

// kernel: conv_layer_forward.2
$region0: #{conv_layer_forward.2}
  #allocation0 [shape = 'u32[]', space=smem, size = 0x4, offset = 0x4, fixed_abs, tag = 'smem constant byte address 0x4 - core index']
  #allocation1 [shape = 'u32[144,128]{1,0:T(1,128)}', space=vmem, size = 0x12000, scoped, tag = 'internal scratch']
  %s0 = inlined_call_operand.vmem [shape: bf16[8,48], index: 0, kind: input, shape index: {}]
  %s1 = inlined_call_operand.vmem [shape: bf16[2,48,256], index: 1, kind: input, shape index: {}]
  %s2 = inlined_call_operand.vmem [shape: f32[2,8,256], index: 2, kind: output, shape index: {0}]
  %s3 = inlined_call_operand.vmem [shape: f32[2,8,1], index: 3, kind: output, shape index: {1}]
  %s4 = inlined_call_operand.vmem [shape: f32[2,8,1], index: 4, kind: output, shape index: {2}]
  %5 = xla_tuple %s2, %s3, %s4
  %s6 = sld [smem:[#allocation0]]
  $region61: #{conv_layer_forward.2} parent=0
    _
  %s8 = ssub.s32 1, %s6
  %s9 = scalar_select 0, %s8, %s6
  loop: start=0, step=1, limit=4
  $region2: #{conv_layer_forward.2} parent=0 // loop_pre_header
    _
  $region3: #{conv_layer_forward.2} parent=0 // loop_header
    %s11 = sphi 0, %s15
    %p12 = scmp.ge.s32.totalorder %s11, 4
    %s18 = sphi 0, %s30
    %s19 = sphi 0, %s26
    %s20 = sphi 0, %s18
    %s21 = sphi 0, %s19
    %s22 = sphi 0, %s20
    %s23 = sphi 0, %s21
    %s31 = sphi 0, %s31
    %s33 = sphi 0, %s31
    %s34 = sphi 0, %s33
    %s48 = sphi 0, %s34
    %s56 = sphi 0, %s58
    %s59 = sphi 0, %s56
    %s60 = sphi 0, %s59
    %s76 = sphi 0, %s60
    %s84 = sphi 0, %s86
    %s87 = sphi 0, %s84
    %s88 = sphi 0, %s87
    %s104 = sphi 0, %s88
    %s110 = sphi 0, %s112
    %s113 = sphi 0, %s110
    %s114 = sphi 0, %s113
    %s130 = sphi 0, %s114
    %s136 = sphi 0, %s138
    %s139 = sphi 0, %s136
    %s140 = sphi 0, %s139
    %s156 = sphi 0, %s140
  $region4: #{conv_layer_forward.2} parent=0 // loop_header_branch
    %14 = sbr.rel (%p12) target = $region8
  $region5: #{conv_layer_forward.2} parent=0 // loop_body
    %s16 = ssub.s32 %s11, 1
    %s17 = ssub.s32 %s11, 2
    %s24 = sadd.s32 1, %s19
    %p25 = scmp.ge.s32.totalorder %s24, 1
    %s26 = scalar_select %p25, 0, %s24
    %s27 = sadd.s32 1, %s18
    %s28 = scalar_select %p25, %s27, %s18
    %p29 = scmp.ge.s32.totalorder %s28, 2
    %s30 = scalar_select %p29, 0, %s28
    %s32 = sadd.s32 %s31, 1
    %p35 = scmp.eq.s32.totalorder %s11, 1
    %p36 = scmp.ne.s32.totalorder %s31, %s33
    %p37 = scmp.eq.s32.totalorder %s11, 0
    %p38 = por %p36, %p37
    %p39 = scmp.ne.s32.totalorder %s31, %s33
    %p40 = scmp.eq.s32.totalorder %s16, 1
    %p41 = por %p39, %p40
    %p42 = scmp.ne.s32.totalorder %s33, %s34
    %p43 = scmp.eq.s32.totalorder %s16, 0
    %p44 = por %p42, %p43
    %p45 = scmp.ne.s32.totalorder %s33, %s34
    %p46 = scmp.eq.s32.totalorder %s17, 1
    %p47 = por %p45, %p46
    %p49 = scmp.ne.s32.totalorder %s34, %s48
    %p50 = scmp.eq.s32.totalorder %s17, 0
    %p51 = por %p49, %p50
    %s52 = ssub.s32 %s18, %s30
    %s53 = ssub.s32 %s19, %s26
    %s54 = sor.u32 %s52, %s53
    %p55 = scmp.eq.s32.totalorder %s54, 0
    %s57 = sadd.s32 %s56, 1
    %s58 = scalar_select %p55, %s56, %s57
    %p61 = pneg %p55
    %p62 = scmp.eq.s32.totalorder %s11, 1
    %p63 = por %p61, %p62
    %p64 = scmp.ne.s32.totalorder %s56, %s59
    %p65 = scmp.eq.s32.totalorder %s11, 0
    %p66 = por %p64, %p65
    %p67 = scmp.ne.s32.totalorder %s56, %s59
    %p68 = scmp.eq.s32.totalorder %s16, 1
    %p69 = por %p67, %p68
    %p70 = scmp.ne.s32.totalorder %s59, %s60
    %p71 = scmp.eq.s32.totalorder %s16, 0
    %p72 = por %p70, %p71
    %p73 = scmp.ne.s32.totalorder %s59, %s60
    %p74 = scmp.eq.s32.totalorder %s17, 1
    %p75 = por %p73, %p74
    %p77 = scmp.ne.s32.totalorder %s60, %s76
    %p78 = scmp.eq.s32.totalorder %s17, 0
    %p79 = por %p77, %p78
    %s80 = ssub.s32 %s18, %s30
    %s81 = ssub.s32 %s19, %s26
    %s82 = sor.u32 %s80, %s81
    %p83 = scmp.eq.s32.totalorder %s82, 0
    %s85 = sadd.s32 %s84, 1
    %s86 = scalar_select %p83, %s84, %s85
    %p89 = pneg %p83
    %p90 = scmp.eq.s32.totalorder %s11, 1
    %p91 = por %p89, %p90
    %p92 = scmp.ne.s32.totalorder %s84, %s87
    %p93 = scmp.eq.s32.totalorder %s11, 0
    %p94 = por %p92, %p93
    %p95 = scmp.ne.s32.totalorder %s84, %s87
    %p96 = scmp.eq.s32.totalorder %s16, 1
    %p97 = por %p95, %p96
    %p98 = scmp.ne.s32.totalorder %s87, %s88
    %p99 = scmp.eq.s32.totalorder %s16, 0
    %p100 = por %p98, %p99
    %p101 = scmp.ne.s32.totalorder %s87, %s88
    %p102 = scmp.eq.s32.totalorder %s17, 1
    %p103 = por %p101, %p102
    %p105 = scmp.ne.s32.totalorder %s88, %s104
    %p106 = scmp.eq.s32.totalorder %s17, 0
    %p107 = por %p105, %p106
    %s108 = ssub.s32 %s18, %s30
    %p109 = scmp.eq.s32.totalorder %s108, 0
    %s111 = sadd.s32 %s110, 1
    %s112 = scalar_select %p109, %s110, %s111
    %p115 = pneg %p109
    %p116 = scmp.eq.s32.totalorder %s11, 1
    %p117 = por %p115, %p116
    %p118 = scmp.ne.s32.totalorder %s110, %s113
    %p119 = scmp.eq.s32.totalorder %s11, 0
    %p120 = por %p118, %p119
    %p121 = scmp.ne.s32.totalorder %s110, %s113
    %p122 = scmp.eq.s32.totalorder %s16, 1
    %p123 = por %p121, %p122
    %p124 = scmp.ne.s32.totalorder %s113, %s114
    %p125 = scmp.eq.s32.totalorder %s16, 0
    %p126 = por %p124, %p125
    %p127 = scmp.ne.s32.totalorder %s113, %s114
    %p128 = scmp.eq.s32.totalorder %s17, 1
    %p129 = por %p127, %p128
    %p131 = scmp.ne.s32.totalorder %s114, %s130
    %p132 = scmp.eq.s32.totalorder %s17, 0
    %p133 = por %p131, %p132
    %s134 = ssub.s32 %s18, %s30
    %p135 = scmp.eq.s32.totalorder %s134, 0
    %s137 = sadd.s32 %s136, 1
    %s138 = scalar_select %p135, %s136, %s137
    %p141 = pneg %p135
    %p142 = scmp.eq.s32.totalorder %s11, 1
    %p143 = por %p141, %p142
    %p144 = scmp.ne.s32.totalorder %s136, %s139
    %p145 = scmp.eq.s32.totalorder %s11, 0
    %p146 = por %p144, %p145
    %p147 = scmp.ne.s32.totalorder %s136, %s139
    %p148 = scmp.eq.s32.totalorder %s16, 1
    %p149 = por %p147, %p148
    %p150 = scmp.ne.s32.totalorder %s139, %s140
    %p151 = scmp.eq.s32.totalorder %s16, 0
    %p152 = por %p150, %p151
    %p153 = scmp.ne.s32.totalorder %s139, %s140
    %p154 = scmp.eq.s32.totalorder %s17, 1
    %p155 = por %p153, %p154
    %p157 = scmp.ne.s32.totalorder %s140, %s156
    %p158 = scmp.eq.s32.totalorder %s17, 0
    %p159 = por %p157, %p158
    %p160 = scmp.le.s32.totalorder 1, %s11
    %p161 = scmp.lt.s32.totalorder %s11, 3
    %p162 = pnand %p160, %p161
    %p163 = pneg %p162
    // Predicated region
    $region9: #{conv_layer_forward.2} parent=5 // pred_check
      _
    $region10: #{conv_layer_forward.2} parent=5 // pred_check_branch
      %165 = sbr.rel (%p162) target = $region12
    $region11: #{conv_layer_forward.2} parent=5 // pred_region
      %s166 = ssub.s32 %s11, 1
      // Predicated region
      $region13: #{conv_layer_forward.2} parent=11 // pred_check
        %p167 = pneg %p44
      $region14: #{conv_layer_forward.2} parent=11 // pred_check_branch
        %169 = sbr.rel (%p167) target = $region16
      $region15: #{conv_layer_forward.2} parent=11 // pred_region
        _
      $region16: #{conv_layer_forward.2} parent=11 // pred_fallthru
        _
    $region12: #{conv_layer_forward.2} parent=5 // pred_fallthru
      _
    %p170 = scmp.lt.s32.totalorder %s11, 2
    // Predicated region
    $region17: #{conv_layer_forward.2} parent=5 // pred_check
      %p171 = pneg %p170
    $region18: #{conv_layer_forward.2} parent=5 // pred_check_branch
      %173 = sbr.rel (%p171) target = $region20
    $region19: #{conv_layer_forward.2} parent=5 // pred_region
      // Predicated region
      $region21: #{conv_layer_forward.2} parent=19 // pred_check
        %p174 = pneg %p66
      $region22: #{conv_layer_forward.2} parent=19 // pred_check_branch
        %176 = sbr.rel (%p174) target = $region24
      $region23: #{conv_layer_forward.2} parent=19 // pred_region
        %s177 = smul.u32 2, %s19
        %p178 = scmp.lt.s32.totalorder %s18, 1
        %s179 = scalar_select %p178, %s18, 1
        %p180 = scmp.lt.s32.totalorder %s177, 1
        %s181 = scalar_select %p180, %s177, 1
        %s182 = smul.addr %s179, 12
        %s183 = sadd.s32 %s181, %s182
        %s184 = smul.addr %s183, 4
        %s185 = scalar_lea.vmem %s1, %s184
        %s186 = smul.u32 2, %s19
      $region24: #{conv_layer_forward.2} parent=19 // pred_fallthru
        _
    $region20: #{conv_layer_forward.2} parent=5 // pred_fallthru
      _
    %p187 = scmp.le.s32.totalorder 1, %s11
    %p188 = scmp.lt.s32.totalorder %s11, 3
    %p189 = pnand %p187, %p188
    %p190 = pneg %p189
    // Predicated region
    $region25: #{conv_layer_forward.2} parent=5 // pred_check
      _
    $region26: #{conv_layer_forward.2} parent=5 // pred_check_branch
      %192 = sbr.rel (%p189) target = $region28
    $region27: #{conv_layer_forward.2} parent=5 // pred_region
      %s193 = ssub.s32 %s11, 1
      %p194 = pneg %p44
      %p195 = pneg %p41
      %s196 = smul.u32 2, %s21
      %p197 = scmp.lt.s32.totalorder %s20, 1
      %s198 = scalar_select %p197, %s20, 1
      %p199 = scmp.lt.s32.totalorder %s196, 1
      %s200 = scalar_select %p199, %s196, 1
      %s201 = smul.addr %s198, 12
      %s202 = sadd.s32 %s200, %s201
      %s203 = smul.addr %s202, 4
      %s204 = scalar_lea.vmem %s1, %s203
      %p205 = pneg %p72
      %p206 = pneg %p69
      %p207 = pneg %p100
      %p208 = pneg %p97
      %s209 = smul.u32 2, %s21
      %p210 = scmp.lt.s32.totalorder %s20, 1
      %s211 = scalar_select %p210, %s20, 1
      %p212 = scmp.lt.s32.totalorder %s209, 1
      %s213 = scalar_select %p212, %s209, 1
      %s214 = smul.addr %s211, 2
      %s215 = sadd.s32 %s213, %s214
      %s216 = smul.addr %s215, 8
      %s217 = scalar_lea.vmem %s2, %s216
      %p218 = pneg %p126
      %p219 = pneg %p123
      %p220 = scmp.lt.s32.totalorder %s20, 1
      %s221 = scalar_select %p220, %s20, 1
      %s222 = smul.addr %s221, 8
      %s223 = scalar_lea.vmem %s3, %s222
      %p224 = pneg %p152
      %p225 = pneg %p149
      %p226 = scmp.lt.s32.totalorder %s20, 1
      %s227 = scalar_select %p226, %s20, 1
      %s228 = smul.addr %s227, 8
      %s229 = scalar_lea.vmem %s4, %s228
      %s230 = smul.u32 2, %s21
      %p231 = scmp.lt.s32.totalorder %s20, 1
      %s232 = scalar_select %p231, %s20, 1
      %p233 = scmp.lt.s32.totalorder %s230, 1
      %s234 = scalar_select %p233, %s230, 1
      %s235 = smul.addr %s232, 12
      %s236 = sadd.s32 %s234, %s235
      %s237 = smul.addr %s236, 4
      %s238 = scalar_lea.vmem %s1, %s237
      %s239 = smul.u32 2, %s21
      %s240 = smul.u32 2, %s21
      %p241 = scmp.lt.s32.totalorder %s20, 1
      %s242 = scalar_select %p241, %s20, 1
      %p243 = scmp.lt.s32.totalorder %s240, 1
      %s244 = scalar_select %p243, %s240, 1
      %s245 = smul.addr %s242, 2
      %s246 = sadd.s32 %s244, %s245
      %s247 = smul.addr %s246, 8
      %s248 = scalar_lea.vmem %s2, %s247
      %s249 = smul.u32 2, %s21
      %p250 = scmp.lt.s32.totalorder %s20, 1
      %s251 = scalar_select %p250, %s20, 1
      %s252 = smul.addr %s251, 8
      %s253 = scalar_lea.vmem %s3, %s252
      %p254 = scmp.lt.s32.totalorder %s20, 1
      %s255 = scalar_select %p254, %s20, 1
      %s256 = smul.addr %s255, 8
      %s257 = scalar_lea.vmem %s4, %s256
      %p259 = scmp.eq.s32.totalorder %s21, 0
      // Predicated region
      $region29: #{conv_layer_forward.2} parent=27 // pred_check
        %p260 = pneg %p259
      $region30: #{conv_layer_forward.2} parent=27 // pred_check_branch
        %262 = sbr.rel (%p260) target = $region32
      $region31: #{conv_layer_forward.2} parent=27 // pred_region
        %vm263 = vcmask 7168
        %264 = vst.msk [vmem:[%s253] sm:$0xff] %vm263, 0.0
        %265 = vst.msk [vmem:[%s257] sm:$0xff] %vm263, 0.0
      $region32: #{conv_layer_forward.2} parent=27 // pred_fallthru
        _
      %v266 = vld [vmem:[%s0] sm:$0xf]
      %v267 = vld [vmem:[%s238] sm:$0xff]
      %v268 = vld [vmem:[%s238 + $0x8] sm:$0xff]
      %v269 = vld [vmem:[%s238 + $0x10] sm:$0xff]
      %v270 = vld [vmem:[%s238 + $0x18] sm:$0xff]
      %v271 = vld [vmem:[%s238 + $0x20] sm:$0xff]
      %v272 = vld [vmem:[%s238 + $0x28] sm:$0xff]
      %v279 = vunpack.c.l.b16 %v267
      %v280 = vunpack.c.h.b16 %v267
      %v281 = vunpack.c.l.b16 %v268
      %v282 = vunpack.c.h.b16 %v268
      %v283 = vunpack.c.l.b16 %v269
      %v284 = vunpack.c.h.b16 %v269
      %v285 = vunpack.c.l.b16 %v270
      %v286 = vunpack.c.h.b16 %v270
      %v287 = vunpack.c.l.b16 %v271
      %v288 = vunpack.c.h.b16 %v271
      %v289 = vunpack.c.l.b16 %v272
      %v290 = vunpack.c.h.b16 %v272
      %v291 = vpack.c.b16 %v281, %v279
      %v292 = vpack.c.b16 %v282, %v280
      %v293 = vpack.c.b16 %v285, %v283
      %v294 = vpack.c.b16 %v286, %v284
      %v295 = vpack.c.b16 %v289, %v287
      %v296 = vpack.c.b16 %v290, %v288
      %vm303 = vcmask 392192
      %v305 = vsel %vm303, %v266, 0
      %307 = vmatprep.subr.bf16.mxu0 %v292
      %308 = vmatpush1.bf16.msra.mxu0 %v291
      %309 = vmatprep.subr.bf16.mxu0 %v294
      %310 = vmatpush1.bf16.msra.mxu0 %v293
      %311 = vmatprep.subr.bf16.mxu0 %v296
      %312 = vmatpush1.bf16.msra.mxu0 %v295
      %313 = vmatprep.subr.bf16.mxu0 0
      %314 = vmatpush1.bf16.msra.mxu0 0
      %315 = vmatprep.subr.bf16.mxu0 0
      %316 = vmatpush1.bf16.msra.mxu0 0
      %317 = vmatprep.subr.bf16.mxu0 0
      %318 = vmatpush1.bf16.msra.mxu0 0
      %319 = vmatprep.subr.bf16.mxu0 0
      %320 = vmatpush1.bf16.msra.mxu0 0
      %321 = vmatprep.subr.bf16.mxu0 0
      %322 = vmatpush1.bf16.msra.mxu0 0
      %323 = vmatprep.subr.bf16.mxu0 0
      %324 = vmatpush1.bf16.msra.mxu0 0
      %325 = vmatprep.subr.bf16.mxu0 0
      %326 = vmatpush1.bf16.msra.mxu0 0
      %327 = vmatprep.subr.bf16.mxu0 0
      %328 = vmatpush1.bf16.msra.mxu0 0
      %329 = vmatprep.subr.bf16.mxu0 0
      %330 = vmatpush1.bf16.msra.mxu0 0
      %331 = vmatprep.subr.bf16.mxu0 0
      %332 = vmatpush1.bf16.msra.mxu0 0
      %333 = vmatprep.subr.bf16.mxu0 0
      %334 = vmatpush1.bf16.msra.mxu0 0
      %335 = vmatprep.subr.bf16.mxu0 0
      %336 = vmatpush1.bf16.msra.mxu0 0
      %337 = vmatprep.subr.bf16.mxu0 0
      %338 = vmatpush1.bf16.msra.mxu0 0
      %339 = vmatprep.mubr.bf16.mxu0 0
      %340 = vmatmul.mubr.bf16.gmra.mrb[0].mxu0 %v305
      %v341 = vpop.f32.mrb[0].mxu0
      %v342 = vadd.f32 0.0, %v341
      %v343 = vpop.f32.mrb[0].mxu0
      %v344 = vadd.f32 0.0, %v343
      %v345 = vpop.f32.mrb[0].mxu0
      %v346 = vpop.f32.mrb[0].mxu0
      %347 = vdwg.mxu0
      %348 = vst [vmem:[%s248] sm:$0xff] %v342
      %349 = vst [vmem:[%s248 + $0x8] sm:$0xff] %v344
      %v350 = vld [vmem:[%s253] sm:$0xff]
      %v351 = vadd.f32 %v342, %v344
      %352 = vadd.xlane.f32.xlu0 %v351
      %v353 = vpop.xlane.xlu0 %352
      %v354 = vadd.f32 %v350, %v353
      %vm355 = vcmask 7168
      %356 = vst.msk [vmem:[%s253] sm:$0xff] %vm355, %v354
      %v357 = vld [vmem:[%s257] sm:$0xff]
      %v358 = vmul.f32 %v342, %v342
      %v359 = vmul.f32 %v344, %v344
      %v360 = vadd.f32 %v358, %v359
      %361 = vadd.xlane.f32.xlu0 %v360
      %v362 = vpop.xlane.xlu0 %361
      %v363 = vadd.f32 %v357, %v362
      %364 = vst.msk [vmem:[%s257] sm:$0xff] %vm355, %v363
      %s365 = smul.u32 2, %s21
      %p366 = scmp.lt.s32.totalorder %s20, 1
      %s367 = scalar_select %p366, %s20, 1
      %p368 = scmp.lt.s32.totalorder %s365, 1
      %s369 = scalar_select %p368, %s365, 1
      %s370 = smul.addr %s367, 2
      %s371 = sadd.s32 %s369, %s370
      %s372 = smul.addr %s371, 8
      %s373 = scalar_lea.vmem %s2, %s372
      %p374 = scmp.lt.s32.totalorder %s20, 1
      %s375 = scalar_select %p374, %s20, 1
      %s376 = smul.addr %s375, 8
      %s377 = scalar_lea.vmem %s3, %s376
      %p378 = scmp.lt.s32.totalorder %s20, 1
      %s379 = scalar_select %p378, %s20, 1
      %s380 = smul.addr %s379, 8
      %s381 = scalar_lea.vmem %s4, %s380
      // Predicated region
      $region33: #{conv_layer_forward.2} parent=27 // pred_check
        %p382 = pneg %p97
      $region34: #{conv_layer_forward.2} parent=27 // pred_check_branch
        %384 = sbr.rel (%p382) target = $region36
      $region35: #{conv_layer_forward.2} parent=27 // pred_region
        %s385 = smul.u32 2, %s21
      $region36: #{conv_layer_forward.2} parent=27 // pred_fallthru
        _
      // Predicated region
      $region37: #{conv_layer_forward.2} parent=27 // pred_check
        %p386 = pneg %p123
      $region38: #{conv_layer_forward.2} parent=27 // pred_check_branch
        %388 = sbr.rel (%p386) target = $region40
      $region39: #{conv_layer_forward.2} parent=27 // pred_region
        _
      $region40: #{conv_layer_forward.2} parent=27 // pred_fallthru
        _
      // Predicated region
      $region41: #{conv_layer_forward.2} parent=27 // pred_check
        %p389 = pneg %p149
      $region42: #{conv_layer_forward.2} parent=27 // pred_check_branch
        %391 = sbr.rel (%p389) target = $region44
      $region43: #{conv_layer_forward.2} parent=27 // pred_region
        _
      $region44: #{conv_layer_forward.2} parent=27 // pred_fallthru
        _
    $region28: #{conv_layer_forward.2} parent=5 // pred_fallthru
      _
    %p392 = scmp.le.s32.totalorder 2, %s11
    // Predicated region
    $region45: #{conv_layer_forward.2} parent=5 // pred_check
      %p393 = pneg %p392
    $region46: #{conv_layer_forward.2} parent=5 // pred_check_branch
      %395 = sbr.rel (%p393) target = $region48
    $region47: #{conv_layer_forward.2} parent=5 // pred_region
      %s396 = ssub.s32 %s11, 2
      // Predicated region
      $region49: #{conv_layer_forward.2} parent=47 // pred_check
        %p397 = pneg %p103
      $region50: #{conv_layer_forward.2} parent=47 // pred_check_branch
        %399 = sbr.rel (%p397) target = $region52
      $region51: #{conv_layer_forward.2} parent=47 // pred_region
        %s400 = smul.u32 2, %s23
        %p401 = scmp.lt.s32.totalorder %s22, 1
        %s402 = scalar_select %p401, %s22, 1
        %p403 = scmp.lt.s32.totalorder %s400, 1
        %s404 = scalar_select %p403, %s400, 1
        %s405 = smul.addr %s402, 2
        %s406 = sadd.s32 %s404, %s405
        %s407 = smul.addr %s406, 8
        %s408 = scalar_lea.vmem %s2, %s407
      $region52: #{conv_layer_forward.2} parent=47 // pred_fallthru
        _
      // Predicated region
      $region53: #{conv_layer_forward.2} parent=47 // pred_check
        %p409 = pneg %p129
      $region54: #{conv_layer_forward.2} parent=47 // pred_check_branch
        %411 = sbr.rel (%p409) target = $region56
      $region55: #{conv_layer_forward.2} parent=47 // pred_region
        %p412 = scmp.lt.s32.totalorder %s22, 1
        %s413 = scalar_select %p412, %s22, 1
        %s414 = smul.addr %s413, 8
        %s415 = scalar_lea.vmem %s3, %s414
      $region56: #{conv_layer_forward.2} parent=47 // pred_fallthru
        _
      // Predicated region
      $region57: #{conv_layer_forward.2} parent=47 // pred_check
        %p416 = pneg %p155
      $region58: #{conv_layer_forward.2} parent=47 // pred_check_branch
        %418 = sbr.rel (%p416) target = $region60
      $region59: #{conv_layer_forward.2} parent=47 // pred_region
        %p419 = scmp.lt.s32.totalorder %s22, 1
        %s420 = scalar_select %p419, %s22, 1
        %s421 = smul.addr %s420, 8
        %s422 = scalar_lea.vmem %s4, %s421
      $region60: #{conv_layer_forward.2} parent=47 // pred_fallthru
        _
    $region48: #{conv_layer_forward.2} parent=5 // pred_fallthru
      _
  $region6: #{conv_layer_forward.2} parent=0 // loop_footer
    %s15 = sadd.s32 1, %s11
  $region7: #{conv_layer_forward.2} parent=0 // loop_footer_branch
    %10 = sbr.rel target = $region3
  $region8: #{conv_layer_forward.2} parent=0 // loop_exit
    _

</llo_original>
